<compile_context>
chip_gen: v6e
topology: v6e:2x2x1
jax: 0.10.0
libtpu: 0.0.40
codegen_flags: <defaults>
</compile_context>

<pallas_src>
import functools

import jax
import jax.numpy as jnp
from jax import lax
from jax.experimental import pallas as pl
from jax.experimental.pallas import tpu as pltpu

MIB = 1024 * 1024


def _cdiv(a, b):
    return -(-a // b)


def _round_up(x, m):
    return ((x + m - 1) // m) * m


def _pack(dtype):
    """Sublane packing multiple for a dtype (8 f32/i32, 16 bf16, 32 int8/bool)."""
    return {1: 32, 2: 16}.get(jnp.dtype(dtype).itemsize, 8)


def _vmem_capacity_bytes():
    try:
        info = pltpu.get_tpu_info()
        for attr in ("vmem_capacity_bytes", "vmem_size_bytes", "vmem_bytes"):
            v = getattr(info, attr, None)
            if v:
                return int(v)
    except Exception:
        pass
    return 128 * MIB


def _acc_out_dtypes(in_dtype):
    if jnp.issubdtype(in_dtype, jnp.floating):
        return jnp.dtype(jnp.float32), jnp.dtype(in_dtype)
    # TODO(synk): torch.Tensor.sum promotes integral/bool dtypes to int64; JAX
    # x64 is off by default, so integer/bool inputs accumulate/return as int32.
    return jnp.dtype(jnp.int32), jnp.dtype(jnp.int32)


# ----------------------------------------------------------------------------
# Kernel A: reduce the middle (sublane) axis of a (tile_pre, tile_r, tile_post)
# block.  Output block (tile_pre, 1, tile_post) is resident across the r axis.
# ----------------------------------------------------------------------------
def _sum_middle_kernel(x_ref, o_ref, *acc_refs, r_total, tile_r, needs_mask,
                       acc_dtype):
    acc_ref = acc_refs[0] if acc_refs else o_ref      # (tile_pre, 1, tile_post)
    r = pl.program_id(2)
    last_r = pl.num_programs(2) - 1

    @pl.when(r == 0)
    def _init():
        acc_ref[...] = jnp.zeros(acc_ref.shape, acc_ref.dtype)

    def _accumulate(mask_rows):
        x = x_ref[...].astype(acc_dtype)              # (tile_pre, tile_r, tile_post)
        if mask_rows:
            # Load-bearing mask: the padded rows of the last partial R block
            # hold stale VMEM and must be zeroed before the reduction.
            row = r * tile_r + lax.broadcasted_iota(jnp.int32, (1, tile_r, 1), 1)
            x = jnp.where(row < r_total, x, jnp.zeros_like(x))
        acc_ref[...] += jnp.sum(x, axis=1, keepdims=True).astype(acc_ref.dtype)

    if needs_mask:
        @pl.when(r < last_r)
        def _fast():
            _accumulate(False)

        @pl.when(r == last_r)
        def _masked():
            _accumulate(True)
    else:
        _accumulate(False)

    if acc_refs:
        @pl.when(r == last_r)
        def _store():
            o_ref[...] = acc_ref[...].astype(o_ref.dtype)


def _sum_middle(x3):
    """Sum a (pre, R, post) array over the middle axis -> (pre, 1, post)."""
    pre, R, post = x3.shape
    in_item = jnp.dtype(x3.dtype).itemsize
    sub_in = _pack(x3.dtype)
    acc_dtype, out_dtype = _acc_out_dtypes(x3.dtype)
    sub_out = _pack(out_dtype)
    out_item = out_dtype.itemsize
    use_scratch = out_dtype != acc_dtype

    vmem_cap = _vmem_capacity_bytes()
    # Resident working-set budget (2x input + 2x output + acc), generation
    # aware: v7x has only 64 MiB VMEM per TensorCore, v5e/v6e have 128 MiB.
    total_budget = 24 * MIB if vmem_cap <= 64 * MIB else 40 * MIB

    # ---- lane tile ----------------------------------------------------------
    if post % 128 == 0:
        tile_post = min(post, 2048)
    elif post <= 2048:
        tile_post = post        # full-dim lane block is legal; no ragged tail
    else:
        tile_post = 2048        # ragged final block; stale lanes never written
    pad_post = _round_up(tile_post, 128)

    # ---- pre / reduction tiles (VMEM footprint counts sublane/lane padding) --
    in_row = _round_up(R, sub_in) * pad_post * in_item      # one pre row, full R
    out_row = sub_out * pad_post * out_item
    acc_row = (8 * pad_post * 4) if use_scratch else 0
    per_row = 2 * in_row + 2 * out_row + acc_row

    if per_row <= total_budget:
        # Whole reduction in one step; pack many pre rows per block.
        tile_r = R
        tile_pre = min(pre, max(1, total_budget // per_row))
    else:
        # Large R: one pre row per step, chunk the reduction axis.
        tile_pre = 1
        fixed = 2 * out_row + acc_row
        avail = max(total_budget - fixed, 2 * sub_in * pad_post * in_item)
        max_r = avail // (2 * pad_post * in_item)
        tile_r = max(sub_in, (max_r // sub_in) * sub_in)

    n_p = _cdiv(pre, tile_pre)
    n_j = _cdiv(post, tile_post)
    n_r = _cdiv(R, tile_r)
    needs_mask = (R % tile_r) != 0

    # v7x has two TensorCores: guarantee >= 2 parallel grid units when cheap.
    if n_p * n_j == 1:
        if pre >= 16:
            tile_pre = _round_up(_cdiv(pre, 2), 8)
            n_p = _cdiv(pre, tile_pre)
        elif post >= 256:
            half = _cdiv(post, 2)
            tile_post = half if half % 128 == 0 else (half // 128) * 128
            pad_post = _round_up(tile_post, 128)
            n_j = _cdiv(post, tile_post)

    # ---- VMEM limit / cost hint ---------------------------------------------
    in_blk = tile_pre * _round_up(tile_r, sub_in) * pad_post * in_item
    out_blk = tile_pre * sub_out * pad_post * out_item
    acc_blk = (tile_pre * 8 * pad_post * 4) if use_scratch else 0
    vmem_limit = 2 * in_blk + 2 * out_blk + acc_blk + 8 * MIB
    vmem_limit = int(min(max(vmem_limit, 32 * MIB), vmem_cap))

    cost = pl.CostEstimate(
        flops=pre * R * post,
        bytes_accessed=pre * R * post * in_item + pre * post * out_item,
        transcendentals=0,
    )

    kernel = functools.partial(
        _sum_middle_kernel,
        r_total=R, tile_r=tile_r, needs_mask=needs_mask, acc_dtype=acc_dtype)

    scratch = ([pltpu.VMEM((tile_pre, 1, tile_post), acc_dtype)]
               if use_scratch else [])

    return pl.pallas_call(
        kernel,
        out_shape=jax.ShapeDtypeStruct((pre, 1, post), out_dtype),
        grid_spec=pltpu.PrefetchScalarGridSpec(
            num_scalar_prefetch=0,
            grid=(n_p, n_j, n_r),                   # reduction axis innermost
            in_specs=[pl.BlockSpec((tile_pre, tile_r, tile_post),
                                   lambda p, j, r: (p, r, j))],
            out_specs=pl.BlockSpec((tile_pre, 1, tile_post),
                                   lambda p, j, r: (p, 0, j)),
            scratch_shapes=scratch,
        ),
        compiler_params=pltpu.CompilerParams(
            dimension_semantics=("parallel", "parallel", "arbitrary"),
            vmem_limit_bytes=vmem_limit,
        ),
        cost_estimate=cost,
    )(x3)


# ----------------------------------------------------------------------------
# Kernel B: reduce the last (lane) axis of a lane-dense (tile_m, tile_r) block.
# Used when post == 1 (sum over the trailing axis).
# ----------------------------------------------------------------------------
def _sum_last_kernel(x_ref, o_ref, *acc_refs, r_total, tile_r, needs_mask,
                     acc_dtype):
    acc_ref = acc_refs[0] if acc_refs else o_ref      # (tile_m, 1)
    r = pl.program_id(1)
    last_r = pl.num_programs(1) - 1

    @pl.when(r == 0)
    def _init():
        acc_ref[...] = jnp.zeros(acc_ref.shape, acc_ref.dtype)

    def _accumulate(mask_cols):
        x = x_ref[...].astype(acc_dtype)              # (tile_m, tile_r)
        if mask_cols:
            col = r * tile_r + lax.broadcasted_iota(jnp.int32, (1, tile_r), 1)
            x = jnp.where(col < r_total, x, jnp.zeros_like(x))
        acc_ref[...] += jnp.sum(x, axis=1, keepdims=True).astype(acc_ref.dtype)

    if needs_mask:
        @pl.when(r < last_r)
        def _fast():
            _accumulate(False)

        @pl.when(r == last_r)
        def _masked():
            _accumulate(True)
    else:
        _accumulate(False)

    if acc_refs:
        @pl.when(r == last_r)
        def _store():
            o_ref[...] = acc_ref[...].astype(o_ref.dtype)


def _sum_last(x2):
    """Sum a (M, R) array over its last (lane) axis -> (M, 1)."""
    M, R = x2.shape
    in_item = jnp.dtype(x2.dtype).itemsize
    sub_in = _pack(x2.dtype)
    acc_dtype, out_dtype = _acc_out_dtypes(x2.dtype)
    sub_out = _pack(out_dtype)
    out_item = out_dtype.itemsize
    use_scratch = out_dtype != acc_dtype

    vmem_cap = _vmem_capacity_bytes()
    total_budget = 24 * MIB if vmem_cap <= 64 * MIB else 40 * MIB

    # Lane (reduction) tile over R — the fast axis of the input stream.
    if R % 128 == 0:
        tile_r = min(R, 2048)
    elif R <= 2048:
        tile_r = R
    else:
        tile_r = 2048
    pad_r = _round_up(tile_r, 128)

    per_m = (2 * pad_r * in_item + 2 * 128 * out_item
             + (128 * 4 if use_scratch else 0))
    max_m = max(1, total_budget // per_m)
    m_mult = max(sub_in, sub_out)
    tile_m = M if M <= max_m else max(m_mult, (max_m // m_mult) * m_mult)

    n_m = _cdiv(M, tile_m)
    n_r = _cdiv(R, tile_r)
    needs_mask = (R % tile_r) != 0

    in_blk = _round_up(tile_m, sub_in) * pad_r * in_item
    out_blk = _round_up(tile_m, sub_out) * 128 * out_item
    acc_blk = (_round_up(tile_m, 8) * 128 * 4) if use_scratch else 0
    vmem_limit = 2 * in_blk + 2 * out_blk + acc_blk + 8 * MIB
    vmem_limit = int(min(max(vmem_limit, 32 * MIB), vmem_cap))

    cost = pl.CostEstimate(
        flops=M * R,
        bytes_accessed=M * R * in_item + M * out_item,
        transcendentals=0,
    )

    kernel = functools.partial(
        _sum_last_kernel,
        r_total=R, tile_r=tile_r, needs_mask=needs_mask, acc_dtype=acc_dtype)

    scratch = [pltpu.VMEM((tile_m, 1), acc_dtype)] if use_scratch else []

    return pl.pallas_call(
        kernel,
        out_shape=jax.ShapeDtypeStruct((M, 1), out_dtype),
        grid_spec=pltpu.PrefetchScalarGridSpec(
            num_scalar_prefetch=0,
            grid=(n_m, n_r),                        # reduction axis innermost
            in_specs=[pl.BlockSpec((tile_m, tile_r), lambda m, r: (m, r))],
            out_specs=pl.BlockSpec((tile_m, 1), lambda m, r: (m, 0)),
            scratch_shapes=scratch,
        ),
        compiler_params=pltpu.CompilerParams(
            dimension_semantics=("parallel", "arbitrary"),
            vmem_limit_bytes=vmem_limit,
        ),
        cost_estimate=cost,
    )(x2)


# ----------------------------------------------------------------------------
# Public wrapper — equivalent of the PyTorch Sum module's forward.
# ----------------------------------------------------------------------------
def pallas_sum(x, dim, keep_dim=False):
    """Equivalent of torch.Tensor.sum(dim, keepdim=keep_dim)."""
    shape = x.shape
    ndim = x.ndim
    dim = dim % ndim

    pre = 1
    for s in shape[:dim]:
        pre *= s
    R = shape[dim]
    post = 1
    for s in shape[dim + 1:]:
        post *= s

    if post == 1:
        # Reduction over the (effective) last axis: lane-dense (M, R) view.
        out = _sum_last(x.reshape(pre, R))            # (pre, 1)
    else:
        # Reduction over a middle axis: (pre, R, post) view, no HBM transpose.
        out = _sum_middle(x.reshape(pre, R, post))    # (pre, 1, post)

    if keep_dim:
        out_shape = shape[:dim] + (1,) + shape[dim + 1:]
    else:
        out_shape = shape[:dim] + shape[dim + 1:]
    return out.reshape(out_shape)


if __name__ == "__main__":
    key = jax.random.PRNGKey(0)
    # NCHW demo input, consistent with the module's typical use after a conv.
    x = jax.random.normal(key, (2, 4, 16, 16), dtype=jnp.float32)

    cases = [(1, False),   # middle-axis reduce (channels)
             (2, True),    # middle-axis reduce, keepdim
             (0, False),   # leading axis (pre == 1)
             (3, False),   # last axis -> lane-dense (M, R) kernel
             (-1, True)]   # negative dim, keepdim
    for dim, keep in cases:
        y = jax.block_until_ready(pallas_sum(x, dim, keep))
        y_ref = jnp.sum(x, axis=dim, keepdims=keep)
        assert y.shape == y_ref.shape, (dim, keep, y.shape, y_ref.shape)
        assert jnp.allclose(y, y_ref, atol=1e-4, rtol=1e-4), (dim, keep)

    # bf16 input exercises the f32 scratch-accumulator + cast-on-store path.
    xb = x.astype(jnp.bfloat16)
    yb = jax.block_until_ready(pallas_sum(xb, 1, False))
    yb_ref = jnp.sum(xb.astype(jnp.float32), axis=1)
    assert yb.shape == yb_ref.shape
    assert jnp.allclose(yb.astype(jnp.float32), yb_ref, atol=5e-2, rtol=5e-2)

    print("KERNEL_OK")
</pallas_src>

<mosaic_0001>
module attributes {stable_mosaic.version = 11 : i64} {
  func.func @_sum_middle_kernel(%arg0: i32, %arg1: i32, %arg2: i32, %arg3: memref<2x4x128xf32, #tpu.memory_space<vmem>>, %arg4: memref<2x1x128xf32, #tpu.memory_space<vmem>>) attributes {dimension_semantics = [#tpu.dimension_semantics<parallel>, #tpu.dimension_semantics<parallel>, #tpu.dimension_semantics<arbitrary>], iteration_bounds = array<i64: 1, 2, 1>, scalar_prefetch = 0 : i64, scratch_operands = 0 : i64, tpu.core_type = #tpu.core_type<tc>, window_params = [{transform_indices = @transform_0, window_bounds = array<i64: 2, 4, 128>}, {transform_indices = @transform_1, window_bounds = array<i64: 2, 1, 128>}]} {
    %c0_i32 = arith.constant 0 : i32
    %0 = arith.cmpi eq, %arg2, %c0_i32 : i32
    %1 = arith.extui %0 : i1 to i32
    %c0_i32_0 = arith.constant 0 : i32
    %2 = arith.cmpi ne, %1, %c0_i32_0 : i32
    scf.if %2 {
      %cst_9 = arith.constant 0.000000e+00 : f32
      %9 = vector.broadcast %cst_9 : f32 to vector<2x1x128xf32>
      %c0_10 = arith.constant 0 : index
      %c0_11 = arith.constant 0 : index
      %c0_12 = arith.constant 0 : index
      %10 = vector.load %arg4[%c0_10, %c0_11, %c0_12] : memref<2x1x128xf32, #tpu.memory_space<vmem>>, vector<2x1x128xf32>
      tpu.vector_store %arg4[%c0_10, %c0_11, %c0_12], %9 {strides = array<i32>} : memref<2x1x128xf32, #tpu.memory_space<vmem>>, vector<2x1x128xf32>,
    } else {
    }
    %c0 = arith.constant 0 : index
    %c0_1 = arith.constant 0 : index
    %c0_2 = arith.constant 0 : index
    %3 = vector.load %arg3[%c0, %c0_1, %c0_2] : memref<2x4x128xf32, #tpu.memory_space<vmem>>, vector<2x4x128xf32>
    %c0_3 = arith.constant 0 : index
    %c0_4 = arith.constant 0 : index
    %c0_5 = arith.constant 0 : index
    %4 = vector.load %arg4[%c0_3, %c0_4, %c0_5] : memref<2x1x128xf32, #tpu.memory_space<vmem>>, vector<2x1x128xf32>
    %cst = arith.constant dense<0.000000e+00> : vector<2x128xf32>
    %5 = vector.multi_reduction <add>, %3, %cst [1] : vector<2x4x128xf32> to vector<2x128xf32>
    %6 = vector.shape_cast %5 : vector<2x128xf32> to vector<2x1x128xf32>
    %7 = arith.addf %4, %6 : vector<2x1x128xf32>
    %c0_6 = arith.constant 0 : index
    %c0_7 = arith.constant 0 : index
    %c0_8 = arith.constant 0 : index
    %8 = vector.load %arg4[%c0_6, %c0_7, %c0_8] : memref<2x1x128xf32, #tpu.memory_space<vmem>>, vector<2x1x128xf32>
    tpu.vector_store %arg4[%c0_6, %c0_7, %c0_8], %7 {strides = array<i32>} : memref<2x1x128xf32, #tpu.memory_space<vmem>>, vector<2x1x128xf32>,
    return
  }
  func.func @transform_0(%arg0: i32, %arg1: i32, %arg2: i32) -> (i32, i32, i32) {
    %c0_i32 = arith.constant 0 : i32
    return %arg0, %arg2, %arg1 : i32, i32, i32
  }
  func.func @transform_1(%arg0: i32, %arg1: i32, %arg2: i32) -> (i32, i32, i32) {
    %c0_i32 = arith.constant 0 : i32
    %c0_i32_0 = arith.constant 0 : i32
    return %arg0, %c0_i32, %arg1 : i32, i32, i32
  }
}

</mosaic_0001>

<llo_original>
// kernel: tpu_custom_call.1
$region0: #{tpu_custom_call.1}
  #allocation0 [shape = 'u32[]', space=smem, size = 0x4, offset = 0x4, fixed_abs, tag = 'smem constant byte address 0x4 - core index']
  #allocation1 [shape = 'u32[144,128]{1,0:T(1,128)}', space=vmem, size = 0x12000, scoped, tag = 'internal scratch']
  %s0 = inlined_call_operand.hbm [shape: f32[2,4,256], index: 0, kind: input, shape index: {}]
  %s1 = inlined_call_operand.hbm [shape: f32[2,1,256], index: 1, kind: output, shape index: {}]
  %s2 = sld [smem:[#allocation0]]
  $region45: #{tpu_custom_call.1} parent=0
    _
  %s4 = ssub.s32 1, %s2
  %s5 = scalar_select 0, %s4, %s2
  $region1: #{tpu_custom_call.1} parent=0
    #allocation2 [shape = 'u8[8192]{0}', space=vmem, size = 0x2000, scoped, tag = 'input window, operand 0']
    #allocation3 [shape = 's32[2]{0}', space=sflag, size = 0x8, scoped, tag = 'scoped memory for tpu_custom_call.1']
    #allocation4 [shape = 's32[2]{0}', space=sflag, size = 0x8, scoped, tag = 'scoped memory for tpu_custom_call.1']
    #allocation5 [shape = 'u8[2048]{0}', space=vmem, size = 0x800, scoped, tag = 'output window, operand 0']
    %6 = vsyncpa [#allocation3], 0
    %s7 = scalar_lea.sflag [#allocation3], 1
    %8 = vsyncpa %s7, 0
    %9 = vsyncpa [#allocation4], 0
    %s10 = scalar_lea.sflag [#allocation4], 1
    %11 = vsyncpa %s10, 0
    loop: start=0, step=1, limit=4
    $region2: #{tpu_custom_call.1} parent=1 // loop_pre_header
      _
    $region3: #{tpu_custom_call.1} parent=1 // loop_header
      %s13 = sphi 0, %s17
      %p14 = scmp.ge.s32.totalorder %s13, 4
      %s20 = sphi 0, %s39
      %s21 = sphi 0, %s35
      %s22 = sphi 0, %s31
      %s23 = sphi 0, %s20
      %s24 = sphi 0, %s21
      %s25 = sphi 0, %s22
      %s26 = sphi 0, %s23
      %s27 = sphi 0, %s24
      %s28 = sphi 0, %s25
      %s46 = sphi 0, %s48
      %s49 = sphi 0, %s46
      %s50 = sphi 0, %s49
      %s66 = sphi 0, %s50
      %s74 = sphi 0, %s76
      %s77 = sphi 0, %s74
      %s78 = sphi 0, %s77
      %s94 = sphi 0, %s78
    $region4: #{tpu_custom_call.1} parent=1 // loop_header_branch
      %16 = sbr.rel (%p14) target = $region8
    $region5: #{tpu_custom_call.1} parent=1 // loop_body
      %s18 = ssub.s32 %s13, 1
      %s19 = ssub.s32 %s13, 2
      %s29 = sadd.s32 1, %s22
      %p30 = scmp.ge.s32.totalorder %s29, 1
      %s31 = scalar_select %p30, 0, %s29
      %s32 = sadd.s32 1, %s21
      %s33 = scalar_select %p30, %s32, %s21
      %p34 = scmp.ge.s32.totalorder %s33, 2
      %s35 = scalar_select %p34, 0, %s33
      %s36 = sadd.s32 1, %s20
      %s37 = scalar_select %p34, %s36, %s20
      %p38 = scmp.ge.s32.totalorder %s37, 1
      %s39 = scalar_select %p38, 0, %s37
      %s40 = ssub.s32 %s20, %s39
      %s41 = ssub.s32 %s22, %s31
      %s42 = sor.u32 %s40, %s41
      %s43 = ssub.s32 %s21, %s35
      %s44 = sor.u32 %s42, %s43
      %p45 = scmp.eq.s32.totalorder %s44, 0
      %s47 = sadd.s32 %s46, 1
      %s48 = scalar_select %p45, %s46, %s47
      %p51 = pneg %p45
      %p52 = scmp.eq.s32.totalorder %s13, 1
      %p53 = por %p51, %p52
      %p54 = scmp.ne.s32.totalorder %s46, %s49
      %p55 = scmp.eq.s32.totalorder %s13, 0
      %p56 = por %p54, %p55
      %p57 = scmp.ne.s32.totalorder %s46, %s49
      %p58 = scmp.eq.s32.totalorder %s18, 1
      %p59 = por %p57, %p58
      %p60 = scmp.ne.s32.totalorder %s49, %s50
      %p61 = scmp.eq.s32.totalorder %s18, 0
      %p62 = por %p60, %p61
      %p63 = scmp.ne.s32.totalorder %s49, %s50
      %p64 = scmp.eq.s32.totalorder %s19, 1
      %p65 = por %p63, %p64
      %p67 = scmp.ne.s32.totalorder %s50, %s66
      %p68 = scmp.eq.s32.totalorder %s19, 0
      %p69 = por %p67, %p68
      %s70 = ssub.s32 %s20, %s39
      %s71 = ssub.s32 %s21, %s35
      %s72 = sor.u32 %s70, %s71
      %p73 = scmp.eq.s32.totalorder %s72, 0
      %s75 = sadd.s32 %s74, 1
      %s76 = scalar_select %p73, %s74, %s75
      %p79 = pneg %p73
      %p80 = scmp.eq.s32.totalorder %s13, 1
      %p81 = por %p79, %p80
      %p82 = scmp.ne.s32.totalorder %s74, %s77
      %p83 = scmp.eq.s32.totalorder %s13, 0
      %p84 = por %p82, %p83
      %p85 = scmp.ne.s32.totalorder %s74, %s77
      %p86 = scmp.eq.s32.totalorder %s18, 1
      %p87 = por %p85, %p86
      %p88 = scmp.ne.s32.totalorder %s77, %s78
      %p89 = scmp.eq.s32.totalorder %s18, 0
      %p90 = por %p88, %p89
      %p91 = scmp.ne.s32.totalorder %s77, %s78
      %p92 = scmp.eq.s32.totalorder %s19, 1
      %p93 = por %p91, %p92
      %p95 = scmp.ne.s32.totalorder %s78, %s94
      %p96 = scmp.eq.s32.totalorder %s19, 0
      %p97 = por %p95, %p96
      %p98 = scmp.le.s32.totalorder 1, %s13
      %p99 = scmp.lt.s32.totalorder %s13, 3
      %p100 = pnand %p98, %p99
      %p101 = pneg %p100
      // Predicated region
      $region9: #{tpu_custom_call.1} parent=5 // pred_check
        _
      $region10: #{tpu_custom_call.1} parent=5 // pred_check_branch
        %103 = sbr.rel (%p100) target = $region12
      $region11: #{tpu_custom_call.1} parent=5 // pred_region
        %s104 = ssub.s32 %s13, 1
      $region12: #{tpu_custom_call.1} parent=5 // pred_fallthru
        _
      %p105 = scmp.lt.s32.totalorder %s13, 2
      // Predicated region
      $region13: #{tpu_custom_call.1} parent=5 // pred_check
        %p106 = pneg %p105
      $region14: #{tpu_custom_call.1} parent=5 // pred_check_branch
        %108 = sbr.rel (%p106) target = $region16
      $region15: #{tpu_custom_call.1} parent=5 // pred_region
        // Predicated region
        $region17: #{tpu_custom_call.1} parent=15 // pred_check
          %p109 = pneg %p56
        $region18: #{tpu_custom_call.1} parent=15 // pred_check_branch
          %111 = sbr.rel (%p109) target = $region20
        $region19: #{tpu_custom_call.1} parent=15 // pred_region
          %s112 = sand.u32 %s46, 1
          %s113 = scalar_lea.sflag [#allocation3], %s112
          %s114 = sand.u32 %s46, 1
          %s115 = smul.addr %s114, 8
          %s116 = scalar_lea.vmem [#allocation2], %s115
          %s117 = smul.u32 2, %s20
          %s119 = ssub.s32 128, 128
          %120 = vsyncadd %s113, %s119
          %s121 = smul.addr %s22, 2
          %s122 = sadd.s32 %s21, %s121
          %s123 = smul.addr %s117, 2
          %s124 = sadd.s32 %s122, %s123
          %s125 = smul.addr %s124, 64
          %s126 = scalar_lea.hbm %s0, %s125
          %s127 = sshll.u32 %s116, 4
          %s128 = int_to_ptr.vmem [resolvable:$true] %s127
          %133 = dma.hbm_to_vmem [thread:$0]  %s126, 128, %s128, %s113, 128, 64, 4
        $region20: #{tpu_custom_call.1} parent=15 // pred_fallthru
          _
      $region16: #{tpu_custom_call.1} parent=5 // pred_fallthru
        _
      %p134 = scmp.le.s32.totalorder 1, %s13
      %p135 = scmp.lt.s32.totalorder %s13, 3
      %p136 = pnand %p134, %p135
      %p137 = pneg %p136
      // Predicated region
      $region21: #{tpu_custom_call.1} parent=5 // pred_check
        _
      $region22: #{tpu_custom_call.1} parent=5 // pred_check_branch
        %139 = sbr.rel (%p136) target = $region24
      $region23: #{tpu_custom_call.1} parent=5 // pred_region
        %s140 = ssub.s32 %s13, 1
        %s141 = sand.u32 %s49, 1
        %s142 = scalar_lea.sflag [#allocation3], %s141
        %s143 = sand.u32 %s49, 1
        %s144 = smul.addr %s143, 8
        %s145 = scalar_lea.vmem [#allocation2], %s144
        // Predicated region
        $region25: #{tpu_custom_call.1} parent=23 // pred_check
          %p146 = pneg %p62
        $region26: #{tpu_custom_call.1} parent=23 // pred_check_branch
          %148 = sbr.rel (%p146) target = $region28
        $region27: #{tpu_custom_call.1} parent=23 // pred_region
          %149 = dma.done %s142, 128
        $region28: #{tpu_custom_call.1} parent=23 // pred_fallthru
          _
        %s150 = sand.u32 %s49, 1
        %s151 = scalar_lea.sflag [#allocation3], %s150
        %s152 = sand.u32 %s49, 1
        %s153 = smul.addr %s152, 8
        %s154 = scalar_lea.vmem [#allocation2], %s153
        %p155 = pneg %p62
        %p156 = pneg %p59
        %p157 = pneg %p90
        %p158 = pneg %p87
        %s159 = sand.u32 %s77, 1
        %s160 = scalar_lea.sflag [#allocation4], %s159
        %s161 = sand.u32 %s77, 1
        %s162 = smul.addr %s161, 2
        %s163 = scalar_lea.vmem [#allocation5], %s162
        %s164 = smul.u32 2, %s23
        %s165 = smul.u32 2, %s23
        %p166 = scmp.eq.s32.totalorder %s25, 0
        // Predicated region
        $region29: #{tpu_custom_call.1} parent=23 // pred_check
          %p167 = pneg %p166
        $region30: #{tpu_custom_call.1} parent=23 // pred_check_branch
          %169 = sbr.rel (%p167) target = $region32
        $region31: #{tpu_custom_call.1} parent=23 // pred_region
          %170 = vst [vmem:[%s163] sm:$0x1] 0.0
          %171 = vst [vmem:[%s163 + $0x1] sm:$0x1] 0.0
        $region32: #{tpu_custom_call.1} parent=23 // pred_fallthru
          _
        %v172 = vld [vmem:[%s145] sm:$0xf]
        %v173 = vld [vmem:[%s145 + $0x4] sm:$0xf]
        %v174 = vld [vmem:[%s163] sm:$0x1]
        %v175 = vld [vmem:[%s163 + $0x1] sm:$0x1]
        %vm176 = vcmask 1043456
        %v177 = vsel %vm176, %v172, 0.0
        %v178 = vrot.slane %v177, 4
        %v179 = vadd.f32 %v177, %v178
        %v180 = vrot.slane %v179, 2
        %v181 = vadd.f32 %v179, %v180
        %v182 = vrot.slane %v181, 1
        %v183 = vadd.f32 %v181, %v182
        %v184 = vsel %vm176, %v173, 0.0
        %v185 = vrot.slane %v184, 4
        %v186 = vadd.f32 %v184, %v185
        %v187 = vrot.slane %v186, 2
        %v188 = vadd.f32 %v186, %v187
        %v189 = vrot.slane %v188, 1
        %v190 = vadd.f32 %v188, %v189
        %v191 = vadd.f32 %v174, %v183
        %v192 = vadd.f32 %v175, %v190
        %193 = vst [vmem:[%s163] sm:$0x1] %v191
        %194 = vst [vmem:[%s163 + $0x1] sm:$0x1] %v192
        %s195 = sand.u32 %s77, 1
        %s196 = scalar_lea.sflag [#allocation4], %s195
        %s197 = sand.u32 %s77, 1
        %s198 = smul.addr %s197, 2
        %s199 = scalar_lea.vmem [#allocation5], %s198
        // Predicated region
        $region33: #{tpu_custom_call.1} parent=23 // pred_check
          %p200 = pneg %p87
        $region34: #{tpu_custom_call.1} parent=23 // pred_check_branch
          %202 = sbr.rel (%p200) target = $region36
        $region35: #{tpu_custom_call.1} parent=23 // pred_region
          %s203 = smul.u32 2, %s23
          %s205 = ssub.s32 32, 32
          %206 = vsyncadd %s196, %s205
          %s207 = smul.addr %s203, 2
          %s208 = sadd.s32 %s24, %s207
          %s209 = smul.addr %s208, 16
          %s210 = scalar_lea.hbm %s1, %s209
          %s211 = sshll.u32 %s199, 4
          %s212 = int_to_ptr.vmem [resolvable:$true] %s211
          %217 = dma.vmem_to_hbm [thread:$0]  %s212, 32, %s210, %s196, 16, 32, 1
        $region36: #{tpu_custom_call.1} parent=23 // pred_fallthru
          _
      $region24: #{tpu_custom_call.1} parent=5 // pred_fallthru
        _
      %p218 = scmp.le.s32.totalorder 2, %s13
      // Predicated region
      $region37: #{tpu_custom_call.1} parent=5 // pred_check
        %p219 = pneg %p218
      $region38: #{tpu_custom_call.1} parent=5 // pred_check_branch
        %221 = sbr.rel (%p219) target = $region40
      $region39: #{tpu_custom_call.1} parent=5 // pred_region
        %s222 = ssub.s32 %s13, 2
        // Predicated region
        $region41: #{tpu_custom_call.1} parent=39 // pred_check
          %p223 = pneg %p93
        $region42: #{tpu_custom_call.1} parent=39 // pred_check_branch
          %225 = sbr.rel (%p223) target = $region44
        $region43: #{tpu_custom_call.1} parent=39 // pred_region
          %s226 = sand.u32 %s78, 1
          %s227 = scalar_lea.sflag [#allocation4], %s226
          %s228 = sand.u32 %s78, 1
          %s229 = smul.addr %s228, 2
          %s230 = scalar_lea.vmem [#allocation5], %s229
          %231 = dma.done %s227, 32
        $region44: #{tpu_custom_call.1} parent=39 // pred_fallthru
          _
      $region40: #{tpu_custom_call.1} parent=5 // pred_fallthru
        _
    $region6: #{tpu_custom_call.1} parent=1 // loop_footer
      %s17 = sadd.s32 1, %s13
    $region7: #{tpu_custom_call.1} parent=1 // loop_footer_branch
      %12 = sbr.rel target = $region3
    $region8: #{tpu_custom_call.1} parent=1 // loop_exit
      _
    %232 = vsyncpa [#allocation3], 1
    %s233 = scalar_lea.sflag [#allocation3], 1
    %234 = vsyncpa %s233, 1
    %235 = vsyncpa [#allocation4], 1
    %s236 = scalar_lea.sflag [#allocation4], 1
    %237 = vsyncpa %s236, 1

</llo_original>
